<compile_context>
chip_gen: v7x
topology: tpu7x:2x2x1
jax: 0.10.0
libtpu: 0.0.40
codegen_flags: <defaults>
</compile_context>

<pallas_src>
import functools

import jax
import jax.numpy as jnp
from jax.experimental import pallas as pl
from jax.experimental.pallas import tpu as pltpu

_LANE = 128
_SUB = 8
_SLAB = 128  # width of the packed output slab (one lane-dense vreg row)


def _round_up(x, m):
    return ((x + m - 1) // m) * m


# ----------------------------------------------------------------------------
# Kernel: full fused forward for one batch tile.
# ----------------------------------------------------------------------------
def _beta_vae_kernel(slope, slab_w,
                     x_ref, eps_ref,
                     w1_ref, wsq_ref, bsq_ref,
                     whead_ref, bhead_ref,
                     wd1_ref, wd3_ref, bd3_ref,
                     out_ref):
    def lrelu(v):
        # max(v, slope*v) == LeakyReLU for 0 < slope < 1; 2 VPU ops vs 3.
        return jnp.maximum(v, slope * v)

    def lin(h, w, b):
        # MXU matmul with f32 accumulation, bias added in the epilogue.
        return jnp.dot(h, w, preferred_element_type=jnp.float32) + b

    bsq = bsq_ref[...]  # (6, h_p): rows = b1, b2, b3, b4, bd1, bd2

    x = x_ref[...].astype(jnp.float32)

    # ---- encoder: 4 x (Linear + LeakyReLU)
    h = lrelu(lin(x, w1_ref[...], bsq[0:1]))
    h = lrelu(lin(h, wsq_ref[0], bsq[1:2]))
    h = lrelu(lin(h, wsq_ref[1], bsq[2:3]))
    h = lrelu(lin(h, wsq_ref[2], bsq[3:4]))

    # ---- fused mu/logvar head: single N = 2*slab_w matmul.
    # first half  a : mu @ [0:zd), mu @ [zd:2zd), logvar @ [2zd:3zd), 0 elsewhere
    # second half b : logvar @ [zd:2zd), 0 elsewhere
    mulv = lin(h, whead_ref[...], bhead_ref[...])
    a = mulv[:, :slab_w]
    b = mulv[:, slab_w:]

    # ---- reparameterize.  eps is host-placed at lanes [zd:2zd) and zero
    # elsewhere; b is zero outside [zd:2zd) so exp(0)*0 = 0 keeps `a` intact.
    slab = a + jnp.exp(b * 0.5) * eps_ref[...].astype(jnp.float32)
    # slab: mu @ [0:zd), z @ [zd:2zd), logvar @ [2zd:3zd), 0 elsewhere

    # ---- decoder.  wd1 rows are placed at [zd:2zd) so only lrelu(z) feeds it.
    d = lrelu(slab)
    h = lrelu(lin(d, wd1_ref[...], bsq[4:5]))
    h = lrelu(lin(h, wsq_ref[3], bsq[5:6]))
    # wd3 columns placed at [3zd:3zd+input_dim): x_recon lands in the free
    # lanes of the slab -> single lane-dense (tm, slab_w) output store.
    out = slab + lin(h, wd3_ref[...], bd3_ref[...])
    out_ref[...] = out.astype(out_ref.dtype)


# ----------------------------------------------------------------------------
# Host-side parameter packing (run ONCE, not per forward call).
# ----------------------------------------------------------------------------
def pack_beta_vae_params(params, *, input_dim, z_dim, hidden_dim):
    zd = z_dim
    # Packed-output layout needs mu|z|logvar|x_recon to fit in one 128 slab.
    assert 3 * zd + input_dim <= _SLAB, "need 3*z_dim + input_dim <= 128"
    # TODO(synk): add an unpacked multi-output fallback for larger z_dim/input_dim.

    h_p = _round_up(hidden_dim, _LANE)
    din_p = _round_up(input_dim, _SUB)

    def f32(a):
        return jnp.asarray(a, jnp.float32)

    def pad2(a, rows, cols):
        a = f32(a)
        return jnp.pad(a, ((0, rows - a.shape[0]), (0, cols - a.shape[1])))

    def padb(b, cols):
        return pad2(f32(b).reshape(1, -1), 1, cols)

    w1 = pad2(params["w1"], din_p, h_p)
    wsq = jnp.stack([pad2(params["w2"], h_p, h_p),
                     pad2(params["w3"], h_p, h_p),
                     pad2(params["w4"], h_p, h_p),
                     pad2(params["wd2"], h_p, h_p)])
    bsq = jnp.concatenate([padb(params["b1"], h_p),
                           padb(params["b2"], h_p),
                           padb(params["b3"], h_p),
                           padb(params["b4"], h_p),
                           padb(params["bd1"], h_p),
                           padb(params["bd2"], h_p)], axis=0)

    # Fused head weight (h_p, 2*_SLAB): mu weights duplicated into the z lanes,
    # logvar weights placed at both its output lanes and the second half.
    whead = jnp.zeros((h_p, 2 * _SLAB), jnp.float32)
    whead = whead.at[:hidden_dim, 0:zd].set(f32(params["w_mu"]))
    whead = whead.at[:hidden_dim, zd:2 * zd].set(f32(params["w_mu"]))
    whead = whead.at[:hidden_dim, 2 * zd:3 * zd].set(f32(params["w_lv"]))
    whead = whead.at[:hidden_dim, _SLAB + zd:_SLAB + 2 * zd].set(f32(params["w_lv"]))

    bhead = jnp.zeros((1, 2 * _SLAB), jnp.float32)
    bhead = bhead.at[0, 0:zd].set(f32(params["b_mu"]))
    bhead = bhead.at[0, zd:2 * zd].set(f32(params["b_mu"]))
    bhead = bhead.at[0, 2 * zd:3 * zd].set(f32(params["b_lv"]))
    bhead = bhead.at[0, _SLAB + zd:_SLAB + 2 * zd].set(f32(params["b_lv"]))

    # Decoder first linear: its input rows correspond to slab lanes -> rows at
    # [zd:2zd) (where z lives); all other rows zero.
    wd1 = jnp.zeros((_SLAB, h_p), jnp.float32)
    wd1 = wd1.at[zd:2 * zd, :hidden_dim].set(f32(params["wd1"]))

    # Decoder last linear: columns placed at [3zd:3zd+input_dim) of the slab.
    wd3 = jnp.zeros((h_p, _SLAB), jnp.float32)
    wd3 = wd3.at[:hidden_dim, 3 * zd:3 * zd + input_dim].set(f32(params["wd3"]))
    bd3 = jnp.zeros((1, _SLAB), jnp.float32)
    bd3 = bd3.at[0, 3 * zd:3 * zd + input_dim].set(f32(params["bd3"]))

    return dict(w1=w1, wsq=wsq, bsq=bsq, whead=whead, bhead=bhead,
                wd1=wd1, wd3=wd3, bd3=bd3)


# ----------------------------------------------------------------------------
# Host wrapper
# ----------------------------------------------------------------------------
def beta_vae_mlp_forward(x, eps, packed, *, input_dim, z_dim,
                         leaky_relu_slope=0.2, block_rows=512):
    """Fused Pallas forward.  Returns (x_recon, mu, logvar, z) matching
    BetaVAE_MLP.forward(return_z=True); `eps` is the std-normal sample that
    torch's `reparametrize` would draw internally."""
    zd = z_dim
    lead = x.shape[:-1]
    assert x.shape[-1] == input_dim and eps.shape[-1] == z_dim

    xb = jnp.asarray(x, jnp.float32).reshape(-1, input_dim)
    eb = jnp.asarray(eps, jnp.float32).reshape(-1, z_dim)
    batch = xb.shape[0]

    din_p = packed["w1"].shape[0]

    # Batch tiling: big tiles (amortize ~0.35us/step pipeline overhead) but at
    # least 2 grid steps when the batch is big enough so both v7x TensorCores
    # get work from the "parallel" axis.
    tm = min(_round_up(batch, _SUB), int(block_rows))
    if batch > 256:
        tm = min(tm, _round_up(-(-batch // 2), _SUB))
    b_pad = _round_up(batch, tm)
    grid = (b_pad // tm,)

    # x stays narrow (din_p = round_up(input_dim, 8) lanes) -> ~16x less read
    # traffic than padding to 128.  eps is pre-placed at the z lanes [zd:2zd).
    xp = jnp.zeros((b_pad, din_p), jnp.float32).at[:batch, :input_dim].set(xb)
    ep = jnp.zeros((b_pad, _SLAB), jnp.float32).at[:batch, zd:2 * zd].set(eb)

    def tile_spec(width):
        return pl.BlockSpec((tm, width), lambda i: (i, 0))

    def full_spec(a):
        # Whole array as one block, same block every grid step -> resident in
        # VMEM, no re-fetch between batch tiles.
        return pl.BlockSpec(a.shape, lambda i, nd=a.ndim: (0,) * nd)

    order = ("w1", "wsq", "bsq", "whead", "bhead", "wd1", "wd3", "bd3")
    w_args = [packed[k] for k in order]

    in_specs = [tile_spec(din_p), tile_spec(_SLAB)] + [full_spec(a) for a in w_args]
    out_specs = tile_spec(_SLAB)
    out_shape = jax.ShapeDtypeStruct((b_pad, _SLAB), jnp.float32)

    kernel = functools.partial(_beta_vae_kernel, float(leaky_relu_slope), _SLAB)

    out = pl.pallas_call(
        kernel,
        out_shape=out_shape,
        grid_spec=pltpu.PrefetchScalarGridSpec(
            num_scalar_prefetch=0,
            grid=grid,
            in_specs=in_specs,
            out_specs=out_specs,
        ),
        compiler_params=pltpu.CompilerParams(
            dimension_semantics=("parallel",),   # shard batch tiles across TCs
            vmem_limit_bytes=32 * 1024 * 1024,
        ),
    )(xp, ep, *w_args)

    mu = out[:batch, 0:zd]
    z = out[:batch, zd:2 * zd]
    lv = out[:batch, 2 * zd:3 * zd]
    xr = out[:batch, 3 * zd:3 * zd + input_dim]
    return (xr.reshape(*lead, input_dim), mu.reshape(*lead, zd),
            lv.reshape(*lead, zd), z.reshape(*lead, zd))


# ----------------------------------------------------------------------------
# Parameter init (kaiming_normal_ weights; PyTorch zeroes biases — a small
# bias_scale is offered purely to exercise the bias-packing path in tests).
# ----------------------------------------------------------------------------
def _kaiming(key, fan_in, fan_out):
    std = (2.0 / fan_in) ** 0.5
    return jax.random.normal(key, (fan_in, fan_out), dtype=jnp.float32) * std


def init_beta_vae_params(key, input_dim=3, z_dim=10, hidden_dim=128,
                         bias_scale=0.0):
    ks = jax.random.split(key, 17)
    p = {}
    p["w1"] = _kaiming(ks[0], input_dim, hidden_dim)
    p["w2"] = _kaiming(ks[1], hidden_dim, hidden_dim)
    p["w3"] = _kaiming(ks[2], hidden_dim, hidden_dim)
    p["w4"] = _kaiming(ks[3], hidden_dim, hidden_dim)
    w5 = _kaiming(ks[4], hidden_dim, 2 * z_dim)          # final encoder Linear
    p["w_mu"], p["w_lv"] = w5[:, :z_dim], w5[:, z_dim:]
    p["wd1"] = _kaiming(ks[5], z_dim, hidden_dim)
    p["wd2"] = _kaiming(ks[6], hidden_dim, hidden_dim)
    p["wd3"] = _kaiming(ks[7], hidden_dim, input_dim)

    def bias(k, n):
        if bias_scale == 0.0:
            return jnp.zeros((n,), jnp.float32)
        return bias_scale * jax.random.normal(k, (n,), dtype=jnp.float32)

    p["b1"] = bias(ks[8], hidden_dim)
    p["b2"] = bias(ks[9], hidden_dim)
    p["b3"] = bias(ks[10], hidden_dim)
    p["b4"] = bias(ks[11], hidden_dim)
    p["b_mu"] = bias(ks[12], z_dim)
    p["b_lv"] = bias(ks[13], z_dim)
    p["bd1"] = bias(ks[14], hidden_dim)
    p["bd2"] = bias(ks[15], hidden_dim)
    p["bd3"] = bias(ks[16], input_dim)
    return p


# ----------------------------------------------------------------------------
# Pure-JAX reference (same math, same weights, same eps) for verification.
# ----------------------------------------------------------------------------
def _ref_forward(x, eps, params, z_dim, slope=0.2):
    def lrelu(v):
        return jnp.where(v > 0, v, slope * v)

    lead = x.shape[:-1]
    input_dim = x.shape[-1]
    xb = x.reshape(-1, input_dim).astype(jnp.float32)
    eb = eps.reshape(-1, z_dim).astype(jnp.float32)

    dot = functools.partial(jnp.dot, precision=jax.lax.Precision.HIGHEST)
    h = lrelu(dot(xb, params["w1"]) + params["b1"])
    h = lrelu(dot(h, params["w2"]) + params["b2"])
    h = lrelu(dot(h, params["w3"]) + params["b3"])
    h = lrelu(dot(h, params["w4"]) + params["b4"])
    mu = dot(h, params["w_mu"]) + params["b_mu"]
    lv = dot(h, params["w_lv"]) + params["b_lv"]
    z = mu + jnp.exp(lv * 0.5) * eb
    d = lrelu(z)
    d = lrelu(dot(d, params["wd1"]) + params["bd1"])
    d = lrelu(dot(d, params["wd2"]) + params["bd2"])
    xr = dot(d, params["wd3"]) + params["bd3"]
    return (xr.reshape(*lead, input_dim), mu.reshape(*lead, z_dim),
            lv.reshape(*lead, z_dim), z.reshape(*lead, z_dim))


if __name__ == "__main__":
    input_dim, z_dim, hidden_dim = 3, 10, 128
    key = jax.random.PRNGKey(0)
    k_param, k_x, k_eps, k_x2, k_eps2 = jax.random.split(key, 5)

    # Nonzero biases here purely to exercise the bias-packing path.
    params = init_beta_vae_params(k_param, input_dim, z_dim, hidden_dim,
                                  bias_scale=0.01)
    packed = pack_beta_vae_params(params, input_dim=input_dim, z_dim=z_dim,
                                  hidden_dim=hidden_dim)
    packed = jax.block_until_ready(packed)   # pad/pack once, reuse across calls

    def check(x, eps):
        out = beta_vae_mlp_forward(x, eps, packed,
                                   input_dim=input_dim, z_dim=z_dim,
                                   leaky_relu_slope=0.2)
        out = jax.block_until_ready(out)
        ref = _ref_forward(x, eps, params, z_dim)
        for got, want, name in zip(out, ref, ("x_recon", "mu", "logvar", "z")):
            assert got.shape == want.shape, (name, got.shape, want.shape)
            err = float(jnp.max(jnp.abs(got - want)))
            assert jnp.allclose(got, want, rtol=2e-3, atol=2e-3), (name, err)

    # Small batch with leading dims (grid = 1), matching the module defaults.
    x = jax.random.normal(k_x, (2, 4, input_dim), dtype=jnp.float32)
    eps = jax.random.normal(k_eps, (2, 4, z_dim), dtype=jnp.float32)
    check(x, eps)

    # Larger batch that exercises the multi-tile "parallel" grid path.
    x2 = jax.random.normal(k_x2, (600, input_dim), dtype=jnp.float32)
    eps2 = jax.random.normal(k_eps2, (600, z_dim), dtype=jnp.float32)
    check(x2, eps2)

    print("KERNEL_OK")
</pallas_src>

<mosaic_0001>
module attributes {stable_mosaic.version = 11 : i64} {
  func.func @_beta_vae_kernel(%arg0: i32, %arg1: memref<8x8xf32, #tpu.memory_space<vmem>>, %arg2: memref<8x128xf32, #tpu.memory_space<vmem>>, %arg3: memref<8x128xf32, #tpu.memory_space<vmem>>, %arg4: memref<4x128x128xf32, #tpu.memory_space<vmem>>, %arg5: memref<6x128xf32, #tpu.memory_space<vmem>>, %arg6: memref<128x256xf32, #tpu.memory_space<vmem>>, %arg7: memref<1x256xf32, #tpu.memory_space<vmem>>, %arg8: memref<128x128xf32, #tpu.memory_space<vmem>>, %arg9: memref<128x128xf32, #tpu.memory_space<vmem>>, %arg10: memref<1x128xf32, #tpu.memory_space<vmem>>, %arg11: memref<8x128xf32, #tpu.memory_space<vmem>>) attributes {dimension_semantics = [#tpu.dimension_semantics<parallel>], iteration_bounds = array<i64: 1>, scalar_prefetch = 0 : i64, scratch_operands = 0 : i64, tpu.core_type = #tpu.core_type<tc>, window_params = [{transform_indices = @transform_0, window_bounds = array<i64: 8, 8>}, {transform_indices = @transform_1, window_bounds = array<i64: 8, 128>}, {pipeline_mode = #tpu.pipeline_mode<synchronous>, transform_indices = @transform_2, window_bounds = array<i64: 8, 128>}, {pipeline_mode = #tpu.pipeline_mode<synchronous>, transform_indices = @transform_3, window_bounds = array<i64: 4, 128, 128>}, {pipeline_mode = #tpu.pipeline_mode<synchronous>, transform_indices = @transform_4, window_bounds = array<i64: 6, 128>}, {pipeline_mode = #tpu.pipeline_mode<synchronous>, transform_indices = @transform_5, window_bounds = array<i64: 128, 256>}, {pipeline_mode = #tpu.pipeline_mode<synchronous>, transform_indices = @transform_6, window_bounds = array<i64: 1, 256>}, {pipeline_mode = #tpu.pipeline_mode<synchronous>, transform_indices = @transform_7, window_bounds = array<i64: 128, 128>}, {pipeline_mode = #tpu.pipeline_mode<synchronous>, transform_indices = @transform_8, window_bounds = array<i64: 128, 128>}, {pipeline_mode = #tpu.pipeline_mode<synchronous>, transform_indices = @transform_9, window_bounds = array<i64: 1, 128>}, {transform_indices = @transform_10, window_bounds = array<i64: 8, 128>}]} {
    %c0 = arith.constant 0 : index
    %c0_0 = arith.constant 0 : index
    %0 = vector.load %arg5[%c0, %c0_0] : memref<6x128xf32, #tpu.memory_space<vmem>>, vector<6x128xf32>
    %c0_1 = arith.constant 0 : index
    %c0_2 = arith.constant 0 : index
    %1 = vector.load %arg1[%c0_1, %c0_2] : memref<8x8xf32, #tpu.memory_space<vmem>>, vector<8x8xf32>
    %c0_3 = arith.constant 0 : index
    %c0_4 = arith.constant 0 : index
    %2 = vector.load %arg3[%c0_3, %c0_4] : memref<8x128xf32, #tpu.memory_space<vmem>>, vector<8x128xf32>
    %3 = vector.extract_strided_slice %0 {offsets = [0, 0], sizes = [1, 128], strides = [1, 1]} : vector<6x128xf32> to vector<1x128xf32>
    %cst = arith.constant dense<0.000000e+00> : vector<8x128xf32>
    %4 = tpu.matmul %1, %2, %cst {dimension_numbers = #tpu.dot_dimension_numbers<[1], [0], [0], [1], [0, 0, 1, 1], [], []>} : vector<8x8xf32>, vector<8x128xf32>, vector<8x128xf32> -> vector<8x128xf32>
    %5 = vector.broadcast %3 : vector<1x128xf32> to vector<8x128xf32>
    %6 = arith.addf %4, %5 : vector<8x128xf32>
    %cst_5 = arith.constant 2.000000e-01 : f32
    %7 = vector.broadcast %cst_5 : f32 to vector<8x128xf32>
    %8 = arith.mulf %7, %6 : vector<8x128xf32>
    %9 = arith.maximumf %6, %8 : vector<8x128xf32>
    %c0_6 = arith.constant 0 : index
    %c0_7 = arith.constant 0 : index
    %c0_8 = arith.constant 0 : index
    %10 = vector.load %arg4[%c0_6, %c0_7, %c0_8] : memref<4x128x128xf32, #tpu.memory_space<vmem>>, vector<1x128x128xf32>
    %11 = vector.shape_cast %10 : vector<1x128x128xf32> to vector<128x128xf32>
    %12 = vector.extract_strided_slice %0 {offsets = [1, 0], sizes = [1, 128], strides = [1, 1]} : vector<6x128xf32> to vector<1x128xf32>
    %cst_9 = arith.constant dense<0.000000e+00> : vector<8x128xf32>
    %13 = tpu.matmul %9, %11, %cst_9 {dimension_numbers = #tpu.dot_dimension_numbers<[1], [0], [0], [1], [0, 0, 1, 1], [], []>} : vector<8x128xf32>, vector<128x128xf32>, vector<8x128xf32> -> vector<8x128xf32>
    %14 = vector.broadcast %12 : vector<1x128xf32> to vector<8x128xf32>
    %15 = arith.addf %13, %14 : vector<8x128xf32>
    %cst_10 = arith.constant 2.000000e-01 : f32
    %16 = vector.broadcast %cst_10 : f32 to vector<8x128xf32>
    %17 = arith.mulf %16, %15 : vector<8x128xf32>
    %18 = arith.maximumf %15, %17 : vector<8x128xf32>
    %c1 = arith.constant 1 : index
    %c0_11 = arith.constant 0 : index
    %c0_12 = arith.constant 0 : index
    %19 = vector.load %arg4[%c1, %c0_11, %c0_12] : memref<4x128x128xf32, #tpu.memory_space<vmem>>, vector<1x128x128xf32>
    %20 = vector.shape_cast %19 : vector<1x128x128xf32> to vector<128x128xf32>
    %21 = vector.extract_strided_slice %0 {offsets = [2, 0], sizes = [1, 128], strides = [1, 1]} : vector<6x128xf32> to vector<1x128xf32>
    %cst_13 = arith.constant dense<0.000000e+00> : vector<8x128xf32>
    %22 = tpu.matmul %18, %20, %cst_13 {dimension_numbers = #tpu.dot_dimension_numbers<[1], [0], [0], [1], [0, 0, 1, 1], [], []>} : vector<8x128xf32>, vector<128x128xf32>, vector<8x128xf32> -> vector<8x128xf32>
    %23 = vector.broadcast %21 : vector<1x128xf32> to vector<8x128xf32>
    %24 = arith.addf %22, %23 : vector<8x128xf32>
    %cst_14 = arith.constant 2.000000e-01 : f32
    %25 = vector.broadcast %cst_14 : f32 to vector<8x128xf32>
    %26 = arith.mulf %25, %24 : vector<8x128xf32>
    %27 = arith.maximumf %24, %26 : vector<8x128xf32>
    %c2 = arith.constant 2 : index
    %c0_15 = arith.constant 0 : index
    %c0_16 = arith.constant 0 : index
    %28 = vector.load %arg4[%c2, %c0_15, %c0_16] : memref<4x128x128xf32, #tpu.memory_space<vmem>>, vector<1x128x128xf32>
    %29 = vector.shape_cast %28 : vector<1x128x128xf32> to vector<128x128xf32>
    %30 = vector.extract_strided_slice %0 {offsets = [3, 0], sizes = [1, 128], strides = [1, 1]} : vector<6x128xf32> to vector<1x128xf32>
    %cst_17 = arith.constant dense<0.000000e+00> : vector<8x128xf32>
    %31 = tpu.matmul %27, %29, %cst_17 {dimension_numbers = #tpu.dot_dimension_numbers<[1], [0], [0], [1], [0, 0, 1, 1], [], []>} : vector<8x128xf32>, vector<128x128xf32>, vector<8x128xf32> -> vector<8x128xf32>
    %32 = vector.broadcast %30 : vector<1x128xf32> to vector<8x128xf32>
    %33 = arith.addf %31, %32 : vector<8x128xf32>
    %cst_18 = arith.constant 2.000000e-01 : f32
    %34 = vector.broadcast %cst_18 : f32 to vector<8x128xf32>
    %35 = arith.mulf %34, %33 : vector<8x128xf32>
    %36 = arith.maximumf %33, %35 : vector<8x128xf32>
    %c0_19 = arith.constant 0 : index
    %c0_20 = arith.constant 0 : index
    %37 = vector.load %arg6[%c0_19, %c0_20] : memref<128x256xf32, #tpu.memory_space<vmem>>, vector<128x256xf32>
    %c0_21 = arith.constant 0 : index
    %c0_22 = arith.constant 0 : index
    %38 = vector.load %arg7[%c0_21, %c0_22] : memref<1x256xf32, #tpu.memory_space<vmem>>, vector<1x256xf32>
    %cst_23 = arith.constant dense<0.000000e+00> : vector<8x256xf32>
    %39 = tpu.matmul %36, %37, %cst_23 {dimension_numbers = #tpu.dot_dimension_numbers<[1], [0], [0], [1], [0, 0, 1, 1], [], []>} : vector<8x128xf32>, vector<128x256xf32>, vector<8x256xf32> -> vector<8x256xf32>
    %40 = vector.broadcast %38 : vector<1x256xf32> to vector<8x256xf32>
    %41 = arith.addf %39, %40 : vector<8x256xf32>
    %42 = vector.extract_strided_slice %41 {offsets = [0, 0], sizes = [8, 128], strides = [1, 1]} : vector<8x256xf32> to vector<8x128xf32>
    %43 = vector.extract_strided_slice %41 {offsets = [0, 128], sizes = [8, 128], strides = [1, 1]} : vector<8x256xf32> to vector<8x128xf32>
    %cst_24 = arith.constant 5.000000e-01 : f32
    %44 = vector.broadcast %cst_24 : f32 to vector<8x128xf32>
    %45 = arith.mulf %43, %44 : vector<8x128xf32>
    %46 = math.exp %45 : vector<8x128xf32>
    %c0_25 = arith.constant 0 : index
    %c0_26 = arith.constant 0 : index
    %47 = vector.load %arg2[%c0_25, %c0_26] : memref<8x128xf32, #tpu.memory_space<vmem>>, vector<8x128xf32>
    %48 = arith.mulf %46, %47 : vector<8x128xf32>
    %49 = arith.addf %42, %48 : vector<8x128xf32>
    %cst_27 = arith.constant 2.000000e-01 : f32
    %50 = vector.broadcast %cst_27 : f32 to vector<8x128xf32>
    %51 = arith.mulf %50, %49 : vector<8x128xf32>
    %52 = arith.maximumf %49, %51 : vector<8x128xf32>
    %c0_28 = arith.constant 0 : index
    %c0_29 = arith.constant 0 : index
    %53 = vector.load %arg8[%c0_28, %c0_29] : memref<128x128xf32, #tpu.memory_space<vmem>>, vector<128x128xf32>
    %54 = vector.extract_strided_slice %0 {offsets = [4, 0], sizes = [1, 128], strides = [1, 1]} : vector<6x128xf32> to vector<1x128xf32>
    %cst_30 = arith.constant dense<0.000000e+00> : vector<8x128xf32>
    %55 = tpu.matmul %52, %53, %cst_30 {dimension_numbers = #tpu.dot_dimension_numbers<[1], [0], [0], [1], [0, 0, 1, 1], [], []>} : vector<8x128xf32>, vector<128x128xf32>, vector<8x128xf32> -> vector<8x128xf32>
    %56 = vector.broadcast %54 : vector<1x128xf32> to vector<8x128xf32>
    %57 = arith.addf %55, %56 : vector<8x128xf32>
    %cst_31 = arith.constant 2.000000e-01 : f32
    %58 = vector.broadcast %cst_31 : f32 to vector<8x128xf32>
    %59 = arith.mulf %58, %57 : vector<8x128xf32>
    %60 = arith.maximumf %57, %59 : vector<8x128xf32>
    %c3 = arith.constant 3 : index
    %c0_32 = arith.constant 0 : index
    %c0_33 = arith.constant 0 : index
    %61 = vector.load %arg4[%c3, %c0_32, %c0_33] : memref<4x128x128xf32, #tpu.memory_space<vmem>>, vector<1x128x128xf32>
    %62 = vector.shape_cast %61 : vector<1x128x128xf32> to vector<128x128xf32>
    %63 = vector.extract_strided_slice %0 {offsets = [5, 0], sizes = [1, 128], strides = [1, 1]} : vector<6x128xf32> to vector<1x128xf32>
    %cst_34 = arith.constant dense<0.000000e+00> : vector<8x128xf32>
    %64 = tpu.matmul %60, %62, %cst_34 {dimension_numbers = #tpu.dot_dimension_numbers<[1], [0], [0], [1], [0, 0, 1, 1], [], []>} : vector<8x128xf32>, vector<128x128xf32>, vector<8x128xf32> -> vector<8x128xf32>
    %65 = vector.broadcast %63 : vector<1x128xf32> to vector<8x128xf32>
    %66 = arith.addf %64, %65 : vector<8x128xf32>
    %cst_35 = arith.constant 2.000000e-01 : f32
    %67 = vector.broadcast %cst_35 : f32 to vector<8x128xf32>
    %68 = arith.mulf %67, %66 : vector<8x128xf32>
    %69 = arith.maximumf %66, %68 : vector<8x128xf32>
    %c0_36 = arith.constant 0 : index
    %c0_37 = arith.constant 0 : index
    %70 = vector.load %arg9[%c0_36, %c0_37] : memref<128x128xf32, #tpu.memory_space<vmem>>, vector<128x128xf32>
    %c0_38 = arith.constant 0 : index
    %c0_39 = arith.constant 0 : index
    %71 = vector.load %arg10[%c0_38, %c0_39] : memref<1x128xf32, #tpu.memory_space<vmem>>, vector<1x128xf32>
    %cst_40 = arith.constant dense<0.000000e+00> : vector<8x128xf32>
    %72 = tpu.matmul %69, %70, %cst_40 {dimension_numbers = #tpu.dot_dimension_numbers<[1], [0], [0], [1], [0, 0, 1, 1], [], []>} : vector<8x128xf32>, vector<128x128xf32>, vector<8x128xf32> -> vector<8x128xf32>
    %73 = vector.broadcast %71 : vector<1x128xf32> to vector<8x128xf32>
    %74 = arith.addf %72, %73 : vector<8x128xf32>
    %75 = arith.addf %49, %74 : vector<8x128xf32>
    %c0_41 = arith.constant 0 : index
    %c0_42 = arith.constant 0 : index
    %76 = vector.load %arg11[%c0_41, %c0_42] : memref<8x128xf32, #tpu.memory_space<vmem>>, vector<8x128xf32>
    tpu.vector_store %arg11[%c0_41, %c0_42], %75 {strides = array<i32>} : memref<8x128xf32, #tpu.memory_space<vmem>>, vector<8x128xf32>,
    return
  }
  func.func @transform_0(%arg0: i32) -> (i32, i32) {
    %c0_i32 = arith.constant 0 : i32
    %c0_i32_0 = arith.constant 0 : i32
    return %arg0, %c0_i32 : i32, i32
  }
  func.func @transform_1(%arg0: i32) -> (i32, i32) {
    %c0_i32 = arith.constant 0 : i32
    %c0_i32_0 = arith.constant 0 : i32
    return %arg0, %c0_i32 : i32, i32
  }
  func.func @transform_2(%arg0: i32) -> (i32, i32) {
    %c0_i32 = arith.constant 0 : i32
    %c0_i32_0 = arith.constant 0 : i32
    %c0_i32_1 = arith.constant 0 : i32
    return %c0_i32, %c0_i32_0 : i32, i32
  }
  func.func @transform_3(%arg0: i32) -> (i32, i32, i32) {
    %c0_i32 = arith.constant 0 : i32
    %c0_i32_0 = arith.constant 0 : i32
    %c0_i32_1 = arith.constant 0 : i32
    %c0_i32_2 = arith.constant 0 : i32
    return %c0_i32, %c0_i32_0, %c0_i32_1 : i32, i32, i32
  }
  func.func @transform_4(%arg0: i32) -> (i32, i32) {
    %c0_i32 = arith.constant 0 : i32
    %c0_i32_0 = arith.constant 0 : i32
    %c0_i32_1 = arith.constant 0 : i32
    return %c0_i32, %c0_i32_0 : i32, i32
  }
  func.func @transform_5(%arg0: i32) -> (i32, i32) {
    %c0_i32 = arith.constant 0 : i32
    %c0_i32_0 = arith.constant 0 : i32
    %c0_i32_1 = arith.constant 0 : i32
    return %c0_i32, %c0_i32_0 : i32, i32
  }
  func.func @transform_6(%arg0: i32) -> (i32, i32) {
    %c0_i32 = arith.constant 0 : i32
    %c0_i32_0 = arith.constant 0 : i32
    %c0_i32_1 = arith.constant 0 : i32
    return %c0_i32, %c0_i32_0 : i32, i32
  }
  func.func @transform_7(%arg0: i32) -> (i32, i32) {
    %c0_i32 = arith.constant 0 : i32
    %c0_i32_0 = arith.constant 0 : i32
    %c0_i32_1 = arith.constant 0 : i32
    return %c0_i32, %c0_i32_0 : i32, i32
  }
  func.func @transform_8(%arg0: i32) -> (i32, i32) {
    %c0_i32 = arith.constant 0 : i32
    %c0_i32_0 = arith.constant 0 : i32
    %c0_i32_1 = arith.constant 0 : i32
    return %c0_i32, %c0_i32_0 : i32, i32
  }
  func.func @transform_9(%arg0: i32) -> (i32, i32) {
    %c0_i32 = arith.constant 0 : i32
    %c0_i32_0 = arith.constant 0 : i32
    %c0_i32_1 = arith.constant 0 : i32
    return %c0_i32, %c0_i32_0 : i32, i32
  }
  func.func @transform_10(%arg0: i32) -> (i32, i32) {
    %c0_i32 = arith.constant 0 : i32
    %c0_i32_0 = arith.constant 0 : i32
    return %arg0, %c0_i32 : i32, i32
  }
}

</mosaic_0001>

<llo_original>
// kernel: tpu_custom_call.1
$region0: #{tpu_custom_call.1}
  #allocation0 [shape = 'u32[]', space=smem, size = 0x4, offset = 0x4, fixed_abs, tag = 'smem constant byte address 0x4 - core index']
  #allocation1 [shape = 'u32[144,128]{1,0:T(1,128)}', space=vmem, size = 0x12000, scoped, tag = 'internal scratch']
  %s0 = inlined_call_operand.hbm [shape: f32[8,8], index: 0, kind: input, shape index: {}]
  %s1 = inlined_call_operand.hbm [shape: f32[8,128], index: 1, kind: input, shape index: {}]
  %s2 = inlined_call_operand.hbm [shape: f32[8,128], index: 2, kind: input, shape index: {}]
  %s3 = inlined_call_operand.hbm [shape: f32[4,128,128], index: 3, kind: input, shape index: {}]
  %s4 = inlined_call_operand.vmem [shape: f32[6,128], index: 4, kind: input, shape index: {}]
  %s5 = inlined_call_operand.hbm [shape: f32[128,256], index: 5, kind: input, shape index: {}]
  %s6 = inlined_call_operand.vmem [shape: f32[1,256], index: 6, kind: input, shape index: {}]
  %s7 = inlined_call_operand.hbm [shape: f32[128,128], index: 7, kind: input, shape index: {}]
  %s8 = inlined_call_operand.hbm [shape: f32[128,128], index: 8, kind: input, shape index: {}]
  %s9 = inlined_call_operand.vmem [shape: f32[1,128], index: 9, kind: input, shape index: {}]
  %s10 = inlined_call_operand.hbm [shape: f32[8,128], index: 10, kind: output, shape index: {}]
  %s11 = sld [smem:[#allocation0]]
  $region78: #{tpu_custom_call.1} parent=0
    _
  %s13 = ssub.s32 1, %s11
  %s14 = scalar_select 0, %s13, %s11
  $region1: #{tpu_custom_call.1} parent=0
    #allocation2 [shape = 'u8[4096]{0}', space=vmem, size = 0x1000, scoped, tag = 'input window, operand 0, single buffered']
    #allocation3 [shape = 's32[1]{0}', space=sflag, size = 0x4, scoped, tag = 'scoped memory for tpu_custom_call.1']
    #allocation4 [shape = 's32[1]{0}', space=sflag, size = 0x4, scoped, tag = 'scoped memory for tpu_custom_call.1']
    #allocation5 [shape = 'u8[4096]{0}', space=vmem, size = 0x1000, scoped, tag = 'input window, operand 1, single buffered']
    #allocation6 [shape = 's32[1]{0}', space=sflag, size = 0x4, scoped, tag = 'scoped memory for tpu_custom_call.1']
    #allocation7 [shape = 'u8[4096]{0}', space=vmem, size = 0x1000, scoped, tag = 'input window, operand 2, single buffered']
    #allocation8 [shape = 'u8[262144]{0}', space=vmem, size = 0x40000, scoped, tag = 'input window, operand 3, single buffered']
    #allocation9 [shape = 's32[1]{0}', space=sflag, size = 0x4, scoped, tag = 'scoped memory for tpu_custom_call.1']
    #allocation10 [shape = 'u8[131072]{0}', space=vmem, size = 0x20000, scoped, tag = 'input window, operand 5, single buffered']
    #allocation11 [shape = 'u8[65536]{0}', space=vmem, size = 0x10000, scoped, tag = 'input window, operand 7, single buffered']
    #allocation12 [shape = 's32[1]{0}', space=sflag, size = 0x4, scoped, tag = 'scoped memory for tpu_custom_call.1']
    #allocation13 [shape = 'u8[65536]{0}', space=vmem, size = 0x10000, scoped, tag = 'input window, operand 8, single buffered']
    #allocation14 [shape = 'u8[4096]{0}', space=vmem, size = 0x1000, scoped, tag = 'output window, operand 0, single buffered']
    %15 = vsyncpa [#allocation3], 0
    %16 = vsyncpa [#allocation6], 0
    %17 = vsyncpa [#allocation9], 0
    %18 = vsyncpa [#allocation12], 0
    %19 = vsyncpa [#allocation4], 0
    // Predicated region
    $region2: #{tpu_custom_call.1} parent=1 // pred_check
      _
    $region3: #{tpu_custom_call.1} parent=1 // pred_check_branch
      %21 = sbr.rel (0) target = $region5
    $region4: #{tpu_custom_call.1} parent=1 // pred_region
      %s23 = ssub.s32 128, 128
      %24 = vsyncadd [#allocation3], %s23
      %s26 = sshll.u32 [#allocation2], 4
      %s27 = int_to_ptr.vmem [resolvable:$true] %s26
      %29 = dma.hbm_to_vmem [thread:$0]  %s0, 128, %s27, [#allocation3]
    $region5: #{tpu_custom_call.1} parent=1 // pred_fallthru
      _
    // Predicated region
    $region6: #{tpu_custom_call.1} parent=1 // pred_check
      _
    $region7: #{tpu_custom_call.1} parent=1 // pred_check_branch
      %31 = sbr.rel (0) target = $region9
    $region8: #{tpu_custom_call.1} parent=1 // pred_region
      %s33 = ssub.s32 128, 128
      %34 = vsyncadd [#allocation6], %s33
      %s36 = sshll.u32 [#allocation5], 4
      %s37 = int_to_ptr.vmem [resolvable:$true] %s36
      %39 = dma.hbm_to_vmem [thread:$0]  %s1, 128, %s37, [#allocation6]
    $region9: #{tpu_custom_call.1} parent=1 // pred_fallthru
      _
    // Predicated region
    $region10: #{tpu_custom_call.1} parent=1 // pred_check
      _
    $region11: #{tpu_custom_call.1} parent=1 // pred_check_branch
      %41 = sbr.rel (0) target = $region13
    $region12: #{tpu_custom_call.1} parent=1 // pred_region
      %s43 = ssub.s32 128, 128
      %44 = vsyncadd [#allocation6], %s43
      %s46 = sshll.u32 [#allocation7], 4
      %s47 = int_to_ptr.vmem [resolvable:$true] %s46
      %49 = dma.hbm_to_vmem [thread:$0]  %s2, 128, %s47, [#allocation6]
    $region13: #{tpu_custom_call.1} parent=1 // pred_fallthru
      _
    // Predicated region
    $region14: #{tpu_custom_call.1} parent=1 // pred_check
      _
    $region15: #{tpu_custom_call.1} parent=1 // pred_check_branch
      %51 = sbr.rel (0) target = $region17
    $region16: #{tpu_custom_call.1} parent=1 // pred_region
      %s53 = ssub.s32 8192, 8192
      %54 = vsyncadd [#allocation9], %s53
      %s55 = sshll.u32 [#allocation8], 4
      %s56 = int_to_ptr.vmem [resolvable:$true] %s55
      %61 = dma.hbm_to_vmem [thread:$0]  %s3, 8192, %s56, [#allocation9], 128, 128, 8
    $region17: #{tpu_custom_call.1} parent=1 // pred_fallthru
      _
    // Predicated region
    $region18: #{tpu_custom_call.1} parent=1 // pred_check
      _
    $region19: #{tpu_custom_call.1} parent=1 // pred_check_branch
      %63 = sbr.rel (0) target = $region21
    $region20: #{tpu_custom_call.1} parent=1 // pred_region
      _
    $region21: #{tpu_custom_call.1} parent=1 // pred_fallthru
      _
    // Predicated region
    $region22: #{tpu_custom_call.1} parent=1 // pred_check
      _
    $region23: #{tpu_custom_call.1} parent=1 // pred_check_branch
      %65 = sbr.rel (0) target = $region25
    $region24: #{tpu_custom_call.1} parent=1 // pred_region
      %s67 = ssub.s32 4096, 4096
      %68 = vsyncadd [#allocation9], %s67
      %s69 = sshll.u32 [#allocation10], 4
      %s70 = int_to_ptr.vmem [resolvable:$true] %s69
      %75 = dma.hbm_to_vmem [thread:$0]  %s5, 4096, %s70, [#allocation9], 256, 256, 16
    $region25: #{tpu_custom_call.1} parent=1 // pred_fallthru
      _
    // Predicated region
    $region26: #{tpu_custom_call.1} parent=1 // pred_check
      _
    $region27: #{tpu_custom_call.1} parent=1 // pred_check_branch
      %77 = sbr.rel (0) target = $region29
    $region28: #{tpu_custom_call.1} parent=1 // pred_region
      _
    $region29: #{tpu_custom_call.1} parent=1 // pred_fallthru
      _
    // Predicated region
    $region30: #{tpu_custom_call.1} parent=1 // pred_check
      _
    $region31: #{tpu_custom_call.1} parent=1 // pred_check_branch
      %79 = sbr.rel (0) target = $region33
    $region32: #{tpu_custom_call.1} parent=1 // pred_region
      %s81 = ssub.s32 2048, 2048
      %82 = vsyncadd [#allocation12], %s81
      %s83 = sshll.u32 [#allocation11], 4
      %s84 = int_to_ptr.vmem [resolvable:$true] %s83
      %89 = dma.hbm_to_vmem [thread:$0]  %s7, 2048, %s84, [#allocation12], 128, 128, 8
    $region33: #{tpu_custom_call.1} parent=1 // pred_fallthru
      _
    // Predicated region
    $region34: #{tpu_custom_call.1} parent=1 // pred_check
      _
    $region35: #{tpu_custom_call.1} parent=1 // pred_check_branch
      %91 = sbr.rel (0) target = $region37
    $region36: #{tpu_custom_call.1} parent=1 // pred_region
      %s93 = ssub.s32 2048, 2048
      %94 = vsyncadd [#allocation12], %s93
      %s95 = sshll.u32 [#allocation13], 4
      %s96 = int_to_ptr.vmem [resolvable:$true] %s95
      %101 = dma.hbm_to_vmem [thread:$0]  %s8, 2048, %s96, [#allocation12], 128, 128, 8
    $region37: #{tpu_custom_call.1} parent=1 // pred_fallthru
      _
    // Predicated region
    $region38: #{tpu_custom_call.1} parent=1 // pred_check
      _
    $region39: #{tpu_custom_call.1} parent=1 // pred_check_branch
      %103 = sbr.rel (0) target = $region41
    $region40: #{tpu_custom_call.1} parent=1 // pred_region
      _
    $region41: #{tpu_custom_call.1} parent=1 // pred_fallthru
      _
    // Predicated region
    $region42: #{tpu_custom_call.1} parent=1 // pred_check
      _
    $region43: #{tpu_custom_call.1} parent=1 // pred_check_branch
      %105 = sbr.rel (0) target = $region45
    $region44: #{tpu_custom_call.1} parent=1 // pred_region
      %106 = dma.done [#allocation3], 128
    $region45: #{tpu_custom_call.1} parent=1 // pred_fallthru
      _
    // Predicated region
    $region46: #{tpu_custom_call.1} parent=1 // pred_check
      _
    $region47: #{tpu_custom_call.1} parent=1 // pred_check_branch
      %108 = sbr.rel (0) target = $region49
    $region48: #{tpu_custom_call.1} parent=1 // pred_region
      %109 = dma.done [#allocation6], 128
    $region49: #{tpu_custom_call.1} parent=1 // pred_fallthru
      _
    // Predicated region
    $region50: #{tpu_custom_call.1} parent=1 // pred_check
      _
    $region51: #{tpu_custom_call.1} parent=1 // pred_check_branch
      %111 = sbr.rel (0) target = $region53
    $region52: #{tpu_custom_call.1} parent=1 // pred_region
      %112 = dma.done [#allocation6], 128
    $region53: #{tpu_custom_call.1} parent=1 // pred_fallthru
      _
    // Predicated region
    $region54: #{tpu_custom_call.1} parent=1 // pred_check
      _
    $region55: #{tpu_custom_call.1} parent=1 // pred_check_branch
      %114 = sbr.rel (0) target = $region57
    $region56: #{tpu_custom_call.1} parent=1 // pred_region
      %115 = dma.done [#allocation9], 8192
    $region57: #{tpu_custom_call.1} parent=1 // pred_fallthru
      _
    // Predicated region
    $region58: #{tpu_custom_call.1} parent=1 // pred_check
      _
    $region59: #{tpu_custom_call.1} parent=1 // pred_check_branch
      %117 = sbr.rel (0) target = $region61
    $region60: #{tpu_custom_call.1} parent=1 // pred_region
      %118 = dma.done [#allocation9], 4096
    $region61: #{tpu_custom_call.1} parent=1 // pred_fallthru
      _
    // Predicated region
    $region62: #{tpu_custom_call.1} parent=1 // pred_check
      _
    $region63: #{tpu_custom_call.1} parent=1 // pred_check_branch
      %120 = sbr.rel (0) target = $region65
    $region64: #{tpu_custom_call.1} parent=1 // pred_region
      %121 = dma.done [#allocation12], 2048
    $region65: #{tpu_custom_call.1} parent=1 // pred_fallthru
      _
    // Predicated region
    $region66: #{tpu_custom_call.1} parent=1 // pred_check
      _
    $region67: #{tpu_custom_call.1} parent=1 // pred_check_branch
      %123 = sbr.rel (0) target = $region69
    $region68: #{tpu_custom_call.1} parent=1 // pred_region
      %124 = dma.done [#allocation12], 2048
    $region69: #{tpu_custom_call.1} parent=1 // pred_fallthru
      _
    %v125 = vld [vmem:[%s4] sm:$0x3f]
    %v126 = vld [vmem:[#allocation2] sm:$0xff]
    %v127 = vld [vmem:[#allocation7] sm:$0xff]
    %v128 = vlaneseq
    %v129 = vshrl.u32 %v128, 7
    %v130 = vsub.s32 0, %v129
    %v131 = vrot.slane %v125, %v130
    %vm132 = vcmask 64512
    %v134 = vsel %vm132, %v126, 0
    %136 = vmatprep.subr.mxu0 0.0
    %137 = vmatpush1.msra.mxu0 %v127
    %138 = vmatprep.subr.mxu0 0.0
    %139 = vmatpush1.msra.mxu0 0.0
    %140 = vmatprep.subr.mxu0 0.0
    %141 = vmatpush1.msra.mxu0 0.0
    %142 = vmatprep.subr.mxu0 0.0
    %143 = vmatpush1.msra.mxu0 0.0
    %144 = vmatprep.subr.mxu0 0.0
    %145 = vmatpush1.msra.mxu0 0.0
    %146 = vmatprep.subr.mxu0 0.0
    %147 = vmatpush1.msra.mxu0 0.0
    %148 = vmatprep.subr.mxu0 0.0
    %149 = vmatpush1.msra.mxu0 0.0
    %150 = vmatprep.subr.mxu0 0.0
    %151 = vmatpush1.msra.mxu0 0.0
    %152 = vmatprep.subr.mxu0 0.0
    %153 = vmatpush1.msra.mxu0 0.0
    %154 = vmatprep.subr.mxu0 0.0
    %155 = vmatpush1.msra.mxu0 0.0
    %156 = vmatprep.subr.mxu0 0.0
    %157 = vmatpush1.msra.mxu0 0.0
    %158 = vmatprep.subr.mxu0 0.0
    %159 = vmatpush1.msra.mxu0 0.0
    %160 = vmatprep.subr.mxu0 0.0
    %161 = vmatpush1.msra.mxu0 0.0
    %162 = vmatprep.subr.mxu0 0.0
    %163 = vmatpush1.msra.mxu0 0.0
    %164 = vmatprep.subr.mxu0 0.0
    %165 = vmatpush1.msra.mxu0 0.0
    %166 = vmatprep.subr.mxu0 0.0
    %167 = vmatpush1.msra.mxu0 0.0
    %168 = vmatprep.subr.mxu0 0.0
    %169 = vmatpush1.msra.mxu0 0.0
    %170 = vmatprep.subr.mxu0 0.0
    %171 = vmatpush1.msra.mxu0 0.0
    %172 = vmatprep.subr.mxu0 0.0
    %173 = vmatpush1.msra.mxu0 0.0
    %174 = vmatprep.subr.mxu0 0.0
    %175 = vmatpush1.msra.mxu0 0.0
    %176 = vmatprep.subr.mxu0 0.0
    %177 = vmatpush1.msra.mxu0 0.0
    %178 = vmatprep.subr.mxu0 0.0
    %179 = vmatpush1.msra.mxu0 0.0
    %180 = vmatprep.subr.mxu0 0.0
    %181 = vmatpush1.msra.mxu0 0.0
    %182 = vmatprep.subr.mxu0 0.0
    %183 = vmatpush1.msra.mxu0 0.0
    %184 = vmatprep.subr.mxu0 0.0
    %185 = vmatpush1.msra.mxu0 0.0
    %186 = vmatprep.subr.mxu0 0.0
    %187 = vmatpush1.msra.mxu0 0.0
    %188 = vmatprep.subr.mxu0 0.0
    %189 = vmatpush1.msra.mxu0 0.0
    %190 = vmatprep.subr.mxu0 0.0
    %191 = vmatpush1.msra.mxu0 0.0
    %192 = vmatprep.subr.mxu0 0.0
    %193 = vmatpush1.msra.mxu0 0.0
    %194 = vmatprep.subr.mxu0 0.0
    %195 = vmatpush1.msra.mxu0 0.0
    %196 = vmatprep.subr.mxu0 0.0
    %197 = vmatpush1.msra.mxu0 0.0
    %198 = vmatprep.subr.mxu0 0.0
    %199 = vmatpush1.msra.mxu0 0.0
    %200 = vmatprep.mubr.f32.mxu0 0.0
    %201 = vmatmul.mubr.f32.gmra.mrb[0].mxu0 %v134
    %v202 = vpop.f32.mrb[0].mxu0
    %v203 = vadd.f32 %v131, %v202
    %v204 = vpop.f32.mrb[0].mxu0
    %205 = vdwg.mxu0
    %v206 = vmul.f32 %v203, 0.2
    %v207 = vmax.f32 %v203, %v206
    %v208 = vld [vmem:[#allocation8] sm:$0xff]
    %v209 = vld [vmem:[#allocation8 + $0x8] sm:$0xff]
    %v210 = vld [vmem:[#allocation8 + $0x10] sm:$0xff]
    %v211 = vld [vmem:[#allocation8 + $0x18] sm:$0xff]
    %v212 = vld [vmem:[#allocation8 + $0x20] sm:$0xff]
    %v213 = vld [vmem:[#allocation8 + $0x28] sm:$0xff]
    %v214 = vld [vmem:[#allocation8 + $0x30] sm:$0xff]
    %v215 = vld [vmem:[#allocation8 + $0x38] sm:$0xff]
    %v216 = vld [vmem:[#allocation8 + $0x40] sm:$0xff]
    %v217 = vld [vmem:[#allocation8 + $0x48] sm:$0xff]
    %v218 = vld [vmem:[#allocation8 + $0x50] sm:$0xff]
    %v219 = vld [vmem:[#allocation8 + $0x58] sm:$0xff]
    %v220 = vld [vmem:[#allocation8 + $0x60] sm:$0xff]
    %v221 = vld [vmem:[#allocation8 + $0x68] sm:$0xff]
    %v222 = vld [vmem:[#allocation8 + $0x70] sm:$0xff]
    %v223 = vld [vmem:[#allocation8 + $0x78] sm:$0xff]
    %v224 = vlaneseq
    %v225 = vshrl.u32 %v224, 7
    %v226 = vsub.s32 1, %v225
    %v227 = vrot.slane %v125, %v226
    %228 = vmatprep.subr.mxu0 0.0
    %229 = vmatpush1.msra.mxu0 %v208
    %230 = vmatprep.subr.mxu0 0.0
    %231 = vmatpush1.msra.mxu0 %v209
    %232 = vmatprep.subr.mxu0 0.0
    %233 = vmatpush1.msra.mxu0 %v210
    %234 = vmatprep.subr.mxu0 0.0
    %235 = vmatpush1.msra.mxu0 %v211
    %236 = vmatprep.subr.mxu0 0.0
    %237 = vmatpush1.msra.mxu0 %v212
    %238 = vmatprep.subr.mxu0 0.0
    %239 = vmatpush1.msra.mxu0 %v213
    %240 = vmatprep.subr.mxu0 0.0
    %241 = vmatpush1.msra.mxu0 %v214
    %242 = vmatprep.subr.mxu0 0.0
    %243 = vmatpush1.msra.mxu0 %v215
    %244 = vmatprep.subr.mxu0 0.0
    %245 = vmatpush1.msra.mxu0 %v216
    %246 = vmatprep.subr.mxu0 0.0
    %247 = vmatpush1.msra.mxu0 %v217
    %248 = vmatprep.subr.mxu0 0.0
    %249 = vmatpush1.msra.mxu0 %v218
    %250 = vmatprep.subr.mxu0 0.0
    %251 = vmatpush1.msra.mxu0 %v219
    %252 = vmatprep.subr.mxu0 0.0
    %253 = vmatpush1.msra.mxu0 %v220
    %254 = vmatprep.subr.mxu0 0.0
    %255 = vmatpush1.msra.mxu0 %v221
    %256 = vmatprep.subr.mxu0 0.0
    %257 = vmatpush1.msra.mxu0 %v222
    %258 = vmatprep.subr.mxu0 0.0
    %259 = vmatpush1.msra.mxu0 %v223
    %260 = vmatprep.subr.mxu0 0.0
    %261 = vmatpush1.msra.mxu0 0.0
    %262 = vmatprep.subr.mxu0 0.0
    %263 = vmatpush1.msra.mxu0 0.0
    %264 = vmatprep.subr.mxu0 0.0
    %265 = vmatpush1.msra.mxu0 0.0
    %266 = vmatprep.subr.mxu0 0.0
    %267 = vmatpush1.msra.mxu0 0.0
    %268 = vmatprep.subr.mxu0 0.0
    %269 = vmatpush1.msra.mxu0 0.0
    %270 = vmatprep.subr.mxu0 0.0
    %271 = vmatpush1.msra.mxu0 0.0
    %272 = vmatprep.subr.mxu0 0.0
    %273 = vmatpush1.msra.mxu0 0.0
    %274 = vmatprep.subr.mxu0 0.0
    %275 = vmatpush1.msra.mxu0 0.0
    %276 = vmatprep.subr.mxu0 0.0
    %277 = vmatpush1.msra.mxu0 0.0
    %278 = vmatprep.subr.mxu0 0.0
    %279 = vmatpush1.msra.mxu0 0.0
    %280 = vmatprep.subr.mxu0 0.0
    %281 = vmatpush1.msra.mxu0 0.0
    %282 = vmatprep.subr.mxu0 0.0
    %283 = vmatpush1.msra.mxu0 0.0
    %284 = vmatprep.subr.mxu0 0.0
    %285 = vmatpush1.msra.mxu0 0.0
    %286 = vmatprep.subr.mxu0 0.0
    %287 = vmatpush1.msra.mxu0 0.0
    %288 = vmatprep.subr.mxu0 0.0
    %289 = vmatpush1.msra.mxu0 0.0
    %290 = vmatprep.subr.mxu0 0.0
    %291 = vmatpush1.msra.mxu0 0.0
    %292 = vmatprep.mubr.f32.mxu0 0.0
    %293 = vmatmul.mubr.f32.gmra.mrb[0].mxu0 %v207
    %v294 = vpop.f32.mrb[0].mxu0
    %v295 = vadd.f32 %v227, %v294
    %v296 = vpop.f32.mrb[0].mxu0
    %297 = vdwg.mxu0
    %v298 = vmul.f32 %v295, 0.2
    %v299 = vmax.f32 %v295, %v298
    %s300 = scalar_lea.vmem [#allocation8], 128
    %v301 = vld [vmem:[%s300] sm:$0xff]
    %v302 = vld [vmem:[%s300 + $0x8] sm:$0xff]
    %v303 = vld [vmem:[%s300 + $0x10] sm:$0xff]
    %v304 = vld [vmem:[%s300 + $0x18] sm:$0xff]
    %v305 = vld [vmem:[%s300 + $0x20] sm:$0xff]
    %v306 = vld [vmem:[%s300 + $0x28] sm:$0xff]
    %v307 = vld [vmem:[%s300 + $0x30] sm:$0xff]
    %v308 = vld [vmem:[%s300 + $0x38] sm:$0xff]
    %v309 = vld [vmem:[%s300 + $0x40] sm:$0xff]
    %v310 = vld [vmem:[%s300 + $0x48] sm:$0xff]
    %v311 = vld [vmem:[%s300 + $0x50] sm:$0xff]
    %v312 = vld [vmem:[%s300 + $0x58] sm:$0xff]
    %v313 = vld [vmem:[%s300 + $0x60] sm:$0xff]
    %v314 = vld [vmem:[%s300 + $0x68] sm:$0xff]
    %v315 = vld [vmem:[%s300 + $0x70] sm:$0xff]
    %v316 = vld [vmem:[%s300 + $0x78] sm:$0xff]
    %v317 = vlaneseq
    %v318 = vshrl.u32 %v317, 7
    %v319 = vsub.s32 2, %v318
    %v320 = vrot.slane %v125, %v319
    %321 = vmatprep.subr.mxu0 0.0
    %322 = vmatpush1.msra.mxu0 %v301
    %323 = vmatprep.subr.mxu0 0.0
    %324 = vmatpush1.msra.mxu0 %v302
    %325 = vmatprep.subr.mxu0 0.0
    %326 = vmatpush1.msra.mxu0 %v303
    %327 = vmatprep.subr.mxu0 0.0
    %328 = vmatpush1.msra.mxu0 %v304
    %329 = vmatprep.subr.mxu0 0.0
    %330 = vmatpush1.msra.mxu0 %v305
    %331 = vmatprep.subr.mxu0 0.0
    %332 = vmatpush1.msra.mxu0 %v306
    %333 = vmatprep.subr.mxu0 0.0
    %334 = vmatpush1.msra.mxu0 %v307
    %335 = vmatprep.subr.mxu0 0.0
    %336 = vmatpush1.msra.mxu0 %v308
    %337 = vmatprep.subr.mxu0 0.0
    %338 = vmatpush1.msra.mxu0 %v309
    %339 = vmatprep.subr.mxu0 0.0
    %340 = vmatpush1.msra.mxu0 %v310
    %341 = vmatprep.subr.mxu0 0.0
    %342 = vmatpush1.msra.mxu0 %v311
    %343 = vmatprep.subr.mxu0 0.0
    %344 = vmatpush1.msra.mxu0 %v312
    %345 = vmatprep.subr.mxu0 0.0
    %346 = vmatpush1.msra.mxu0 %v313
    %347 = vmatprep.subr.mxu0 0.0
    %348 = vmatpush1.msra.mxu0 %v314
    %349 = vmatprep.subr.mxu0 0.0
    %350 = vmatpush1.msra.mxu0 %v315
    %351 = vmatprep.subr.mxu0 0.0
    %352 = vmatpush1.msra.mxu0 %v316
    %353 = vmatprep.subr.mxu0 0.0
    %354 = vmatpush1.msra.mxu0 0.0
    %355 = vmatprep.subr.mxu0 0.0
    %356 = vmatpush1.msra.mxu0 0.0
    %357 = vmatprep.subr.mxu0 0.0
    %358 = vmatpush1.msra.mxu0 0.0
    %359 = vmatprep.subr.mxu0 0.0
    %360 = vmatpush1.msra.mxu0 0.0
    %361 = vmatprep.subr.mxu0 0.0
    %362 = vmatpush1.msra.mxu0 0.0
    %363 = vmatprep.subr.mxu0 0.0
    %364 = vmatpush1.msra.mxu0 0.0
    %365 = vmatprep.subr.mxu0 0.0
    %366 = vmatpush1.msra.mxu0 0.0
    %367 = vmatprep.subr.mxu0 0.0
    %368 = vmatpush1.msra.mxu0 0.0
    %369 = vmatprep.subr.mxu0 0.0
    %370 = vmatpush1.msra.mxu0 0.0
    %371 = vmatprep.subr.mxu0 0.0
    %372 = vmatpush1.msra.mxu0 0.0
    %373 = vmatprep.subr.mxu0 0.0
    %374 = vmatpush1.msra.mxu0 0.0
    %375 = vmatprep.subr.mxu0 0.0
    %376 = vmatpush1.msra.mxu0 0.0
    %377 = vmatprep.subr.mxu0 0.0
    %378 = vmatpush1.msra.mxu0 0.0
    %379 = vmatprep.subr.mxu0 0.0
    %380 = vmatpush1.msra.mxu0 0.0
    %381 = vmatprep.subr.mxu0 0.0
    %382 = vmatpush1.msra.mxu0 0.0
    %383 = vmatprep.subr.mxu0 0.0
    %384 = vmatpush1.msra.mxu0 0.0
    %385 = vmatprep.mubr.f32.mxu0 0.0
    %386 = vmatmul.mubr.f32.gmra.mrb[0].mxu0 %v299
    %v387 = vpop.f32.mrb[0].mxu0
    %v388 = vadd.f32 %v320, %v387
    %v389 = vpop.f32.mrb[0].mxu0
    %390 = vdwg.mxu0
    %v391 = vmul.f32 %v388, 0.2
    %v392 = vmax.f32 %v388, %v391
    %s393 = scalar_lea.vmem [#allocation8], 256
    %v394 = vld [vmem:[%s393] sm:$0xff]
    %v395 = vld [vmem:[%s393 + $0x8] sm:$0xff]
    %v396 = vld [vmem:[%s393 + $0x10] sm:$0xff]
    %v397 = vld [vmem:[%s393 + $0x18] sm:$0xff]
    %v398 = vld [vmem:[%s393 + $0x20] sm:$0xff]
    %v399 = vld [vmem:[%s393 + $0x28] sm:$0xff]
    %v400 = vld [vmem:[%s393 + $0x30] sm:$0xff]
    %v401 = vld [vmem:[%s393 + $0x38] sm:$0xff]
    %v402 = vld [vmem:[%s393 + $0x40] sm:$0xff]
    %v403 = vld [vmem:[%s393 + $0x48] sm:$0xff]
    %v404 = vld [vmem:[%s393 + $0x50] sm:$0xff]
    %v405 = vld [vmem:[%s393 + $0x58] sm:$0xff]
    %v406 = vld [vmem:[%s393 + $0x60] sm:$0xff]
    %v407 = vld [vmem:[%s393 + $0x68] sm:$0xff]
    %v408 = vld [vmem:[%s393 + $0x70] sm:$0xff]
    %v409 = vld [vmem:[%s393 + $0x78] sm:$0xff]
    %v410 = vlaneseq
    %v411 = vshrl.u32 %v410, 7
    %v412 = vsub.s32 3, %v411
    %v413 = vrot.slane %v125, %v412
    %414 = vmatprep.subr.mxu0 0.0
    %415 = vmatpush1.msra.mxu0 %v394
    %416 = vmatprep.subr.mxu0 0.0
    %417 = vmatpush1.msra.mxu0 %v395
    %418 = vmatprep.subr.mxu0 0.0
    %419 = vmatpush1.msra.mxu0 %v396
    %420 = vmatprep.subr.mxu0 0.0
    %421 = vmatpush1.msra.mxu0 %v397
    %422 = vmatprep.subr.mxu0 0.0
    %423 = vmatpush1.msra.mxu0 %v398
    %424 = vmatprep.subr.mxu0 0.0
    %425 = vmatpush1.msra.mxu0 %v399
    %426 = vmatprep.subr.mxu0 0.0
    %427 = vmatpush1.msra.mxu0 %v400
    %428 = vmatprep.subr.mxu0 0.0
    %429 = vmatpush1.msra.mxu0 %v401
    %430 = vmatprep.subr.mxu0 0.0
    %431 = vmatpush1.msra.mxu0 %v402
    %432 = vmatprep.subr.mxu0 0.0
    %433 = vmatpush1.msra.mxu0 %v403
    %434 = vmatprep.subr.mxu0 0.0
    %435 = vmatpush1.msra.mxu0 %v404
    %436 = vmatprep.subr.mxu0 0.0
    %437 = vmatpush1.msra.mxu0 %v405
    %438 = vmatprep.subr.mxu0 0.0
    %439 = vmatpush1.msra.mxu0 %v406
    %440 = vmatprep.subr.mxu0 0.0
    %441 = vmatpush1.msra.mxu0 %v407
    %442 = vmatprep.subr.mxu0 0.0
    %443 = vmatpush1.msra.mxu0 %v408
    %444 = vmatprep.subr.mxu0 0.0
    %445 = vmatpush1.msra.mxu0 %v409
    %446 = vmatprep.subr.mxu0 0.0
    %447 = vmatpush1.msra.mxu0 0.0
    %448 = vmatprep.subr.mxu0 0.0
    %449 = vmatpush1.msra.mxu0 0.0
    %450 = vmatprep.subr.mxu0 0.0
    %451 = vmatpush1.msra.mxu0 0.0
    %452 = vmatprep.subr.mxu0 0.0
    %453 = vmatpush1.msra.mxu0 0.0
    %454 = vmatprep.subr.mxu0 0.0
    %455 = vmatpush1.msra.mxu0 0.0
    %456 = vmatprep.subr.mxu0 0.0
    %457 = vmatpush1.msra.mxu0 0.0
    %458 = vmatprep.subr.mxu0 0.0
    %459 = vmatpush1.msra.mxu0 0.0
    %460 = vmatprep.subr.mxu0 0.0
    %461 = vmatpush1.msra.mxu0 0.0
    %462 = vmatprep.subr.mxu0 0.0
    %463 = vmatpush1.msra.mxu0 0.0
    %464 = vmatprep.subr.mxu0 0.0
    %465 = vmatpush1.msra.mxu0 0.0
    %466 = vmatprep.subr.mxu0 0.0
    %467 = vmatpush1.msra.mxu0 0.0
    %468 = vmatprep.subr.mxu0 0.0
    %469 = vmatpush1.msra.mxu0 0.0
    %470 = vmatprep.subr.mxu0 0.0
    %471 = vmatpush1.msra.mxu0 0.0
    %472 = vmatprep.subr.mxu0 0.0
    %473 = vmatpush1.msra.mxu0 0.0
    %474 = vmatprep.subr.mxu0 0.0
    %475 = vmatpush1.msra.mxu0 0.0
    %476 = vmatprep.subr.mxu0 0.0
    %477 = vmatpush1.msra.mxu0 0.0
    %478 = vmatprep.mubr.f32.mxu0 0.0
    %479 = vmatmul.mubr.f32.gmra.mrb[0].mxu0 %v392
    %v480 = vpop.f32.mrb[0].mxu0
    %v481 = vadd.f32 %v413, %v480
    %v482 = vpop.f32.mrb[0].mxu0
    %483 = vdwg.mxu0
    %v484 = vmul.f32 %v481, 0.2
    %v485 = vmax.f32 %v481, %v484
    %v486 = vld [vmem:[#allocation10] sm:$0xff]
    %v487 = vld [vmem:[#allocation10 + $0x8] sm:$0xff]
    %v488 = vld [vmem:[#allocation10 + $0x10] sm:$0xff]
    %v489 = vld [vmem:[#allocation10 + $0x18] sm:$0xff]
    %v490 = vld [vmem:[#allocation10 + $0x20] sm:$0xff]
    %v491 = vld [vmem:[#allocation10 + $0x28] sm:$0xff]
    %v492 = vld [vmem:[#allocation10 + $0x30] sm:$0xff]
    %v493 = vld [vmem:[#allocation10 + $0x38] sm:$0xff]
    %v494 = vld [vmem:[#allocation10 + $0x40] sm:$0xff]
    %v495 = vld [vmem:[#allocation10 + $0x48] sm:$0xff]
    %v496 = vld [vmem:[#allocation10 + $0x50] sm:$0xff]
    %v497 = vld [vmem:[#allocation10 + $0x58] sm:$0xff]
    %v498 = vld [vmem:[#allocation10 + $0x60] sm:$0xff]
    %v499 = vld [vmem:[#allocation10 + $0x68] sm:$0xff]
    %v500 = vld [vmem:[#allocation10 + $0x70] sm:$0xff]
    %v501 = vld [vmem:[#allocation10 + $0x78] sm:$0xff]
    %v502 = vld [vmem:[#allocation10 + $0x80] sm:$0xff]
    %v503 = vld [vmem:[#allocation10 + $0x88] sm:$0xff]
    %v504 = vld [vmem:[#allocation10 + $0x90] sm:$0xff]
    %v505 = vld [vmem:[#allocation10 + $0x98] sm:$0xff]
    %v506 = vld [vmem:[#allocation10 + $0xa0] sm:$0xff]
    %v507 = vld [vmem:[#allocation10 + $0xa8] sm:$0xff]
    %v508 = vld [vmem:[#allocation10 + $0xb0] sm:$0xff]
    %v509 = vld [vmem:[#allocation10 + $0xb8] sm:$0xff]
    %v510 = vld [vmem:[#allocation10 + $0xc0] sm:$0xff]
    %v511 = vld [vmem:[#allocation10 + $0xc8] sm:$0xff]
    %v512 = vld [vmem:[#allocation10 + $0xd0] sm:$0xff]
    %v513 = vld [vmem:[#allocation10 + $0xd8] sm:$0xff]
    %v514 = vld [vmem:[#allocation10 + $0xe0] sm:$0xff]
    %v515 = vld [vmem:[#allocation10 + $0xe8] sm:$0xff]
    %v516 = vld [vmem:[#allocation10 + $0xf0] sm:$0xff]
    %v517 = vld [vmem:[#allocation10 + $0xf8] sm:$0xff]
    %v518 = vld [vmem:[%s6] sm:$0x3]
    %v520 = vlaneseq
    %v521 = vshrl.u32 %v520, 7
    %v522 = vsub.s32 0, %v521
    %v523 = vrot.slane %v518, %v522
    %v524 = vlaneseq
    %v525 = vshrl.u32 %v524, 7
    %v526 = vsub.s32 1, %v525
    %v527 = vrot.slane %v518, %v526
    %530 = vmatprep.subr.mxu0 %v487
    %531 = vmatpush1.msra.mxu0 %v486
    %532 = vmatprep.subr.mxu0 %v489
    %533 = vmatpush1.msra.mxu0 %v488
    %534 = vmatprep.subr.mxu0 %v491
    %535 = vmatpush1.msra.mxu0 %v490
    %536 = vmatprep.subr.mxu0 %v493
    %537 = vmatpush1.msra.mxu0 %v492
    %538 = vmatprep.subr.mxu0 %v495
    %539 = vmatpush1.msra.mxu0 %v494
    %540 = vmatprep.subr.mxu0 %v497
    %541 = vmatpush1.msra.mxu0 %v496
    %542 = vmatprep.subr.mxu0 %v499
    %543 = vmatpush1.msra.mxu0 %v498
    %544 = vmatprep.subr.mxu0 %v501
    %545 = vmatpush1.msra.mxu0 %v500
    %546 = vmatprep.subr.mxu0 %v503
    %547 = vmatpush1.msra.mxu0 %v502
    %548 = vmatprep.subr.mxu0 %v505
    %549 = vmatpush1.msra.mxu0 %v504
    %550 = vmatprep.subr.mxu0 %v507
    %551 = vmatpush1.msra.mxu0 %v506
    %552 = vmatprep.subr.mxu0 %v509
    %553 = vmatpush1.msra.mxu0 %v508
    %554 = vmatprep.subr.mxu0 %v511
    %555 = vmatpush1.msra.mxu0 %v510
    %556 = vmatprep.subr.mxu0 %v513
    %557 = vmatpush1.msra.mxu0 %v512
    %558 = vmatprep.subr.mxu0 %v515
    %559 = vmatpush1.msra.mxu0 %v514
    %560 = vmatprep.subr.mxu0 %v517
    %561 = vmatpush1.msra.mxu0 %v516
    %562 = vmatprep.subr.mxu0 0.0
    %563 = vmatpush1.msra.mxu0 0.0
    %564 = vmatprep.subr.mxu0 0.0
    %565 = vmatpush1.msra.mxu0 0.0
    %566 = vmatprep.subr.mxu0 0.0
    %567 = vmatpush1.msra.mxu0 0.0
    %568 = vmatprep.subr.mxu0 0.0
    %569 = vmatpush1.msra.mxu0 0.0
    %570 = vmatprep.subr.mxu0 0.0
    %571 = vmatpush1.msra.mxu0 0.0
    %572 = vmatprep.subr.mxu0 0.0
    %573 = vmatpush1.msra.mxu0 0.0
    %574 = vmatprep.subr.mxu0 0.0
    %575 = vmatpush1.msra.mxu0 0.0
    %576 = vmatprep.subr.mxu0 0.0
    %577 = vmatpush1.msra.mxu0 0.0
    %578 = vmatprep.subr.mxu0 0.0
    %579 = vmatpush1.msra.mxu0 0.0
    %580 = vmatprep.subr.mxu0 0.0
    %581 = vmatpush1.msra.mxu0 0.0
    %582 = vmatprep.subr.mxu0 0.0
    %583 = vmatpush1.msra.mxu0 0.0
    %584 = vmatprep.subr.mxu0 0.0
    %585 = vmatpush1.msra.mxu0 0.0
    %586 = vmatprep.subr.mxu0 0.0
    %587 = vmatpush1.msra.mxu0 0.0
    %588 = vmatprep.subr.mxu0 0.0
    %589 = vmatpush1.msra.mxu0 0.0
    %590 = vmatprep.subr.mxu0 0.0
    %591 = vmatpush1.msra.mxu0 0.0
    %592 = vmatprep.subr.mxu0 0.0
    %593 = vmatpush1.msra.mxu0 0.0
    %594 = vmatprep.mubr.f32.mxu0 0.0
    %595 = vmatmul.mubr.f32.gmra.mrb[0].mxu0 %v485
    %v596 = vpop.f32.mrb[0].mxu0
    %v597 = vadd.f32 %v523, %v596
    %v598 = vpop.f32.mrb[0].mxu0
    %v599 = vadd.f32 %v527, %v598
    %600 = vdwg.mxu0
    %v601 = vmul.f32 %v599, 0.5
    %v602 = vmul.f32 %v601, 1.442695
    %v603 = vpow.pop %v602
    %v604 = vld [vmem:[#allocation5] sm:$0xff]
    %v605 = vmul.f32 %v603, %v604
    %v606 = vadd.f32 %v597, %v605
    %v607 = vmul.f32 %v606, 0.2
    %v608 = vmax.f32 %v606, %v607
    %v609 = vld [vmem:[#allocation11] sm:$0xff]
    %v610 = vld [vmem:[#allocation11 + $0x8] sm:$0xff]
    %v611 = vld [vmem:[#allocation11 + $0x10] sm:$0xff]
    %v612 = vld [vmem:[#allocation11 + $0x18] sm:$0xff]
    %v613 = vld [vmem:[#allocation11 + $0x20] sm:$0xff]
    %v614 = vld [vmem:[#allocation11 + $0x28] sm:$0xff]
    %v615 = vld [vmem:[#allocation11 + $0x30] sm:$0xff]
    %v616 = vld [vmem:[#allocation11 + $0x38] sm:$0xff]
    %v617 = vld [vmem:[#allocation11 + $0x40] sm:$0xff]
    %v618 = vld [vmem:[#allocation11 + $0x48] sm:$0xff]
    %v619 = vld [vmem:[#allocation11 + $0x50] sm:$0xff]
    %v620 = vld [vmem:[#allocation11 + $0x58] sm:$0xff]
    %v621 = vld [vmem:[#allocation11 + $0x60] sm:$0xff]
    %v622 = vld [vmem:[#allocation11 + $0x68] sm:$0xff]
    %v623 = vld [vmem:[#allocation11 + $0x70] sm:$0xff]
    %v624 = vld [vmem:[#allocation11 + $0x78] sm:$0xff]
    %v625 = vlaneseq
    %v626 = vshrl.u32 %v625, 7
    %v627 = vsub.s32 4, %v626
    %v628 = vrot.slane %v125, %v627
    %629 = vmatprep.subr.mxu0 0.0
    %630 = vmatpush1.msra.mxu0 %v609
    %631 = vmatprep.subr.mxu0 0.0
    %632 = vmatpush1.msra.mxu0 %v610
    %633 = vmatprep.subr.mxu0 0.0
    %634 = vmatpush1.msra.mxu0 %v611
    %635 = vmatprep.subr.mxu0 0.0
    %636 = vmatpush1.msra.mxu0 %v612
    %637 = vmatprep.subr.mxu0 0.0
    %638 = vmatpush1.msra.mxu0 %v613
    %639 = vmatprep.subr.mxu0 0.0
    %640 = vmatpush1.msra.mxu0 %v614
    %641 = vmatprep.subr.mxu0 0.0
    %642 = vmatpush1.msra.mxu0 %v615
    %643 = vmatprep.subr.mxu0 0.0
    %644 = vmatpush1.msra.mxu0 %v616
    %645 = vmatprep.subr.mxu0 0.0
    %646 = vmatpush1.msra.mxu0 %v617
    %647 = vmatprep.subr.mxu0 0.0
    %648 = vmatpush1.msra.mxu0 %v618
    %649 = vmatprep.subr.mxu0 0.0
    %650 = vmatpush1.msra.mxu0 %v619
    %651 = vmatprep.subr.mxu0 0.0
    %652 = vmatpush1.msra.mxu0 %v620
    %653 = vmatprep.subr.mxu0 0.0
    %654 = vmatpush1.msra.mxu0 %v621
    %655 = vmatprep.subr.mxu0 0.0
    %656 = vmatpush1.msra.mxu0 %v622
    %657 = vmatprep.subr.mxu0 0.0
    %658 = vmatpush1.msra.mxu0 %v623
    %659 = vmatprep.subr.mxu0 0.0
    %660 = vmatpush1.msra.mxu0 %v624
    %661 = vmatprep.subr.mxu0 0.0
    %662 = vmatpush1.msra.mxu0 0.0
    %663 = vmatprep.subr.mxu0 0.0
    %664 = vmatpush1.msra.mxu0 0.0
    %665 = vmatprep.subr.mxu0 0.0
    %666 = vmatpush1.msra.mxu0 0.0
    %667 = vmatprep.subr.mxu0 0.0
    %668 = vmatpush1.msra.mxu0 0.0
    %669 = vmatprep.subr.mxu0 0.0
    %670 = vmatpush1.msra.mxu0 0.0
    %671 = vmatprep.subr.mxu0 0.0
    %672 = vmatpush1.msra.mxu0 0.0
    %673 = vmatprep.subr.mxu0 0.0
    %674 = vmatpush1.msra.mxu0 0.0
    %675 = vmatprep.subr.mxu0 0.0
    %676 = vmatpush1.msra.mxu0 0.0
    %677 = vmatprep.subr.mxu0 0.0
    %678 = vmatpush1.msra.mxu0 0.0
    %679 = vmatprep.subr.mxu0 0.0
    %680 = vmatpush1.msra.mxu0 0.0
    %681 = vmatprep.subr.mxu0 0.0
    %682 = vmatpush1.msra.mxu0 0.0
    %683 = vmatprep.subr.mxu0 0.0
    %684 = vmatpush1.msra.mxu0 0.0
    %685 = vmatprep.subr.mxu0 0.0
    %686 = vmatpush1.msra.mxu0 0.0
    %687 = vmatprep.subr.mxu0 0.0
    %688 = vmatpush1.msra.mxu0 0.0
    %689 = vmatprep.subr.mxu0 0.0
    %690 = vmatpush1.msra.mxu0 0.0
    %691 = vmatprep.subr.mxu0 0.0
    %692 = vmatpush1.msra.mxu0 0.0
    %693 = vmatprep.mubr.f32.mxu0 0.0
    %694 = vmatmul.mubr.f32.gmra.mrb[0].mxu0 %v608
    %v695 = vpop.f32.mrb[0].mxu0
    %v696 = vadd.f32 %v628, %v695
    %v697 = vpop.f32.mrb[0].mxu0
    %698 = vdwg.mxu0
    %v699 = vmul.f32 %v696, 0.2
    %v700 = vmax.f32 %v696, %v699
    %s701 = scalar_lea.vmem [#allocation8], 384
    %v702 = vld [vmem:[%s701] sm:$0xff]
    %v703 = vld [vmem:[%s701 + $0x8] sm:$0xff]
    %v704 = vld [vmem:[%s701 + $0x10] sm:$0xff]
    %v705 = vld [vmem:[%s701 + $0x18] sm:$0xff]
    %v706 = vld [vmem:[%s701 + $0x20] sm:$0xff]
    %v707 = vld [vmem:[%s701 + $0x28] sm:$0xff]
    %v708 = vld [vmem:[%s701 + $0x30] sm:$0xff]
    %v709 = vld [vmem:[%s701 + $0x38] sm:$0xff]
    %v710 = vld [vmem:[%s701 + $0x40] sm:$0xff]
    %v711 = vld [vmem:[%s701 + $0x48] sm:$0xff]
    %v712 = vld [vmem:[%s701 + $0x50] sm:$0xff]
    %v713 = vld [vmem:[%s701 + $0x58] sm:$0xff]
    %v714 = vld [vmem:[%s701 + $0x60] sm:$0xff]
    %v715 = vld [vmem:[%s701 + $0x68] sm:$0xff]
    %v716 = vld [vmem:[%s701 + $0x70] sm:$0xff]
    %v717 = vld [vmem:[%s701 + $0x78] sm:$0xff]
    %v718 = vlaneseq
    %v719 = vshrl.u32 %v718, 7
    %v720 = vsub.s32 5, %v719
    %v721 = vrot.slane %v125, %v720
    %722 = vmatprep.subr.mxu0 0.0
    %723 = vmatpush1.msra.mxu0 %v702
    %724 = vmatprep.subr.mxu0 0.0
    %725 = vmatpush1.msra.mxu0 %v703
    %726 = vmatprep.subr.mxu0 0.0
    %727 = vmatpush1.msra.mxu0 %v704
    %728 = vmatprep.subr.mxu0 0.0
    %729 = vmatpush1.msra.mxu0 %v705
    %730 = vmatprep.subr.mxu0 0.0
    %731 = vmatpush1.msra.mxu0 %v706
    %732 = vmatprep.subr.mxu0 0.0
    %733 = vmatpush1.msra.mxu0 %v707
    %734 = vmatprep.subr.mxu0 0.0
    %735 = vmatpush1.msra.mxu0 %v708
    %736 = vmatprep.subr.mxu0 0.0
    %737 = vmatpush1.msra.mxu0 %v709
    %738 = vmatprep.subr.mxu0 0.0
    %739 = vmatpush1.msra.mxu0 %v710
    %740 = vmatprep.subr.mxu0 0.0
    %741 = vmatpush1.msra.mxu0 %v711
    %742 = vmatprep.subr.mxu0 0.0
    %743 = vmatpush1.msra.mxu0 %v712
    %744 = vmatprep.subr.mxu0 0.0
    %745 = vmatpush1.msra.mxu0 %v713
    %746 = vmatprep.subr.mxu0 0.0
    %747 = vmatpush1.msra.mxu0 %v714
    %748 = vmatprep.subr.mxu0 0.0
    %749 = vmatpush1.msra.mxu0 %v715
    %750 = vmatprep.subr.mxu0 0.0
    %751 = vmatpush1.msra.mxu0 %v716
    %752 = vmatprep.subr.mxu0 0.0
    %753 = vmatpush1.msra.mxu0 %v717
    %754 = vmatprep.subr.mxu0 0.0
    %755 = vmatpush1.msra.mxu0 0.0
    %756 = vmatprep.subr.mxu0 0.0
    %757 = vmatpush1.msra.mxu0 0.0
    %758 = vmatprep.subr.mxu0 0.0
    %759 = vmatpush1.msra.mxu0 0.0
    %760 = vmatprep.subr.mxu0 0.0
    %761 = vmatpush1.msra.mxu0 0.0
    %762 = vmatprep.subr.mxu0 0.0
    %763 = vmatpush1.msra.mxu0 0.0
    %764 = vmatprep.subr.mxu0 0.0
    %765 = vmatpush1.msra.mxu0 0.0
    %766 = vmatprep.subr.mxu0 0.0
    %767 = vmatpush1.msra.mxu0 0.0
    %768 = vmatprep.subr.mxu0 0.0
    %769 = vmatpush1.msra.mxu0 0.0
    %770 = vmatprep.subr.mxu0 0.0
    %771 = vmatpush1.msra.mxu0 0.0
    %772 = vmatprep.subr.mxu0 0.0
    %773 = vmatpush1.msra.mxu0 0.0
    %774 = vmatprep.subr.mxu0 0.0
    %775 = vmatpush1.msra.mxu0 0.0
    %776 = vmatprep.subr.mxu0 0.0
    %777 = vmatpush1.msra.mxu0 0.0
    %778 = vmatprep.subr.mxu0 0.0
    %779 = vmatpush1.msra.mxu0 0.0
    %780 = vmatprep.subr.mxu0 0.0
    %781 = vmatpush1.msra.mxu0 0.0
    %782 = vmatprep.subr.mxu0 0.0
    %783 = vmatpush1.msra.mxu0 0.0
    %784 = vmatprep.subr.mxu0 0.0
    %785 = vmatpush1.msra.mxu0 0.0
    %786 = vmatprep.mubr.f32.mxu0 0.0
    %787 = vmatmul.mubr.f32.gmra.mrb[0].mxu0 %v700
    %v788 = vpop.f32.mrb[0].mxu0
    %v789 = vadd.f32 %v721, %v788
    %v790 = vpop.f32.mrb[0].mxu0
    %791 = vdwg.mxu0
    %v792 = vmul.f32 %v789, 0.2
    %v793 = vmax.f32 %v789, %v792
    %v794 = vld [vmem:[#allocation13] sm:$0xff]
    %v795 = vld [vmem:[#allocation13 + $0x8] sm:$0xff]
    %v796 = vld [vmem:[#allocation13 + $0x10] sm:$0xff]
    %v797 = vld [vmem:[#allocation13 + $0x18] sm:$0xff]
    %v798 = vld [vmem:[#allocation13 + $0x20] sm:$0xff]
    %v799 = vld [vmem:[#allocation13 + $0x28] sm:$0xff]
    %v800 = vld [vmem:[#allocation13 + $0x30] sm:$0xff]
    %v801 = vld [vmem:[#allocation13 + $0x38] sm:$0xff]
    %v802 = vld [vmem:[#allocation13 + $0x40] sm:$0xff]
    %v803 = vld [vmem:[#allocation13 + $0x48] sm:$0xff]
    %v804 = vld [vmem:[#allocation13 + $0x50] sm:$0xff]
    %v805 = vld [vmem:[#allocation13 + $0x58] sm:$0xff]
    %v806 = vld [vmem:[#allocation13 + $0x60] sm:$0xff]
    %v807 = vld [vmem:[#allocation13 + $0x68] sm:$0xff]
    %v808 = vld [vmem:[#allocation13 + $0x70] sm:$0xff]
    %v809 = vld [vmem:[#allocation13 + $0x78] sm:$0xff]
    %v810 = vld [vmem:[%s9] sm:$0x1]
    %v812 = vlaneseq
    %v813 = vshrl.u32 %v812, 7
    %v814 = vsub.s32 0, %v813
    %v815 = vrot.slane %v810, %v814
    %817 = vmatprep.subr.mxu0 0.0
    %818 = vmatpush1.msra.mxu0 %v794
    %819 = vmatprep.subr.mxu0 0.0
    %820 = vmatpush1.msra.mxu0 %v795
    %821 = vmatprep.subr.mxu0 0.0
    %822 = vmatpush1.msra.mxu0 %v796
    %823 = vmatprep.subr.mxu0 0.0
    %824 = vmatpush1.msra.mxu0 %v797
    %825 = vmatprep.subr.mxu0 0.0
    %826 = vmatpush1.msra.mxu0 %v798
    %827 = vmatprep.subr.mxu0 0.0
    %828 = vmatpush1.msra.mxu0 %v799
    %829 = vmatprep.subr.mxu0 0.0
    %830 = vmatpush1.msra.mxu0 %v800
    %831 = vmatprep.subr.mxu0 0.0
    %832 = vmatpush1.msra.mxu0 %v801
    %833 = vmatprep.subr.mxu0 0.0
    %834 = vmatpush1.msra.mxu0 %v802
    %835 = vmatprep.subr.mxu0 0.0
    %836 = vmatpush1.msra.mxu0 %v803
    %837 = vmatprep.subr.mxu0 0.0
    %838 = vmatpush1.msra.mxu0 %v804
    %839 = vmatprep.subr.mxu0 0.0
    %840 = vmatpush1.msra.mxu0 %v805
    %841 = vmatprep.subr.mxu0 0.0
    %842 = vmatpush1.msra.mxu0 %v806
    %843 = vmatprep.subr.mxu0 0.0
    %844 = vmatpush1.msra.mxu0 %v807
    %845 = vmatprep.subr.mxu0 0.0
    %846 = vmatpush1.msra.mxu0 %v808
    %847 = vmatprep.subr.mxu0 0.0
    %848 = vmatpush1.msra.mxu0 %v809
    %849 = vmatprep.subr.mxu0 0.0
    %850 = vmatpush1.msra.mxu0 0.0
    %851 = vmatprep.subr.mxu0 0.0
    %852 = vmatpush1.msra.mxu0 0.0
    %853 = vmatprep.subr.mxu0 0.0
    %854 = vmatpush1.msra.mxu0 0.0
    %855 = vmatprep.subr.mxu0 0.0
    %856 = vmatpush1.msra.mxu0 0.0
    %857 = vmatprep.subr.mxu0 0.0
    %858 = vmatpush1.msra.mxu0 0.0
    %859 = vmatprep.subr.mxu0 0.0
    %860 = vmatpush1.msra.mxu0 0.0
    %861 = vmatprep.subr.mxu0 0.0
    %862 = vmatpush1.msra.mxu0 0.0
    %863 = vmatprep.subr.mxu0 0.0
    %864 = vmatpush1.msra.mxu0 0.0
    %865 = vmatprep.subr.mxu0 0.0
    %866 = vmatpush1.msra.mxu0 0.0
    %867 = vmatprep.subr.mxu0 0.0
    %868 = vmatpush1.msra.mxu0 0.0
    %869 = vmatprep.subr.mxu0 0.0
    %870 = vmatpush1.msra.mxu0 0.0
    %871 = vmatprep.subr.mxu0 0.0
    %872 = vmatpush1.msra.mxu0 0.0
    %873 = vmatprep.subr.mxu0 0.0
    %874 = vmatpush1.msra.mxu0 0.0
    %875 = vmatprep.subr.mxu0 0.0
    %876 = vmatpush1.msra.mxu0 0.0
    %877 = vmatprep.subr.mxu0 0.0
    %878 = vmatpush1.msra.mxu0 0.0
    %879 = vmatprep.subr.mxu0 0.0
    %880 = vmatpush1.msra.mxu0 0.0
    %881 = vmatprep.mubr.f32.mxu0 0.0
    %882 = vmatmul.mubr.f32.gmra.mrb[0].mxu0 %v793
    %v883 = vpop.f32.mrb[0].mxu0
    %v884 = vadd.f32 %v815, %v883
    %v885 = vpop.f32.mrb[0].mxu0
    %886 = vdwg.mxu0
    %v887 = vadd.f32 %v606, %v884
    %888 = vst [vmem:[#allocation14] sm:$0xff] %v887
    // Predicated region
    $region70: #{tpu_custom_call.1} parent=1 // pred_check
      _
    $region71: #{tpu_custom_call.1} parent=1 // pred_check_branch
      %890 = sbr.rel (0) target = $region73
    $region72: #{tpu_custom_call.1} parent=1 // pred_region
      %s892 = ssub.s32 128, 128
      %893 = vsyncadd [#allocation4], %s892
      %s895 = sshll.u32 [#allocation14], 4
      %s896 = int_to_ptr.vmem [resolvable:$true] %s895
      %898 = dma.vmem_to_hbm [thread:$0]  %s896, 128, %s10, [#allocation4]
    $region73: #{tpu_custom_call.1} parent=1 // pred_fallthru
      _
    // Predicated region
    $region74: #{tpu_custom_call.1} parent=1 // pred_check
      _
    $region75: #{tpu_custom_call.1} parent=1 // pred_check_branch
      %900 = sbr.rel (0) target = $region77
    $region76: #{tpu_custom_call.1} parent=1 // pred_region
      %901 = dma.done [#allocation4], 128
    $region77: #{tpu_custom_call.1} parent=1 // pred_fallthru
      _
    %902 = vsyncpa [#allocation3], 1
    %903 = vsyncpa [#allocation6], 1
    %904 = vsyncpa [#allocation9], 1
    %905 = vsyncpa [#allocation12], 1
    %906 = vsyncpa [#allocation4], 1

</llo_original>
